<compile_context>
chip_gen: v7x
topology: tpu7x:2x2x1
jax: 0.10.0
libtpu: 0.0.40
codegen_flags: <defaults>
</compile_context>

<pallas_src>
import math
import functools

import jax
import jax.numpy as jnp
from jax.experimental import pallas as pl
from jax.experimental.pallas import tpu as pltpu


_INV_SQRT2 = 1.0 / math.sqrt(2.0)


def _tpu_budget():
    """Generation-aware VMEM limit and matmul tile targets."""
    vmem = None
    try:
        vmem = getattr(pltpu.get_tpu_info(), "vmem_capacity_bytes", None)
    except Exception:
        vmem = None
    if vmem is None:
        vmem = 64 * 1024 * 1024              # assume the smallest (v7x) budget
    if vmem >= 100 * 1024 * 1024:            # v5e / v6e: 128 MiB physical VMEM
        return 80 * 1024 * 1024, 512, 1024, 1024
    # v7x: 64 MiB physical -> conservative limit, smaller tiles
    return 40 * 1024 * 1024, 256, 512, 512


VMEM_LIMIT, TM_TARGET, TN_TARGET, TK_TARGET = _tpu_budget()


def _pick_tile(dim, target, align):
    """Largest tile <= target that divides dim and is a multiple of align,
    falling back to the full dim (full-extent blocks are always legal)."""
    if dim <= target:
        return dim
    t = (target // align) * align
    while t >= align:
        if dim % t == 0:
            return t
        t -= align
    return dim


# ----------------------------- Pallas kernels ------------------------------

def _linear_kernel(x_ref, w_ref, b_ref, o_ref, acc_ref, *, activation):
    """One (tm, tn) output tile, accumulated over the K grid axis."""
    @pl.when(pl.program_id(2) == 0)
    def _():
        acc_ref[...] = jnp.zeros_like(acc_ref)

    acc_ref[...] += jnp.dot(x_ref[...], w_ref[...],
                            preferred_element_type=jnp.float32)

    @pl.when(pl.program_id(2) == pl.num_programs(2) - 1)
    def _():
        y = acc_ref[...] + b_ref[...]
        if activation == "gelu":
            # exact (erf-based) GELU, matching torch.nn.functional.gelu default
            y = 0.5 * y * (1.0 + jax.lax.erf(y * _INV_SQRT2))
        o_ref[...] = y.astype(o_ref.dtype)


def _linear_res_ln_kernel(x_ref, w_ref, b_ref, res_ref, g_ref, bt_ref,
                          o_ref, acc_ref, *, eps):
    """Linear with fused bias + residual + LayerNorm epilogue.

    The whole feature dimension lives in one output tile column, so the row
    statistics are computed in the epilogue (saves a full activation pass)."""
    @pl.when(pl.program_id(1) == 0)
    def _():
        acc_ref[...] = jnp.zeros_like(acc_ref)

    acc_ref[...] += jnp.dot(x_ref[...], w_ref[...],
                            preferred_element_type=jnp.float32)

    @pl.when(pl.program_id(1) == pl.num_programs(1) - 1)
    def _():
        y = acc_ref[...] + b_ref[...] + res_ref[...].astype(jnp.float32)
        mu = jnp.mean(y, axis=-1, keepdims=True)
        var = jnp.mean(jnp.square(y - mu), axis=-1, keepdims=True)
        o_ref[...] = ((y - mu) * jax.lax.rsqrt(var + eps) * g_ref[...]
                      + bt_ref[...]).astype(o_ref.dtype)


def pallas_linear(x2d, w, b, *, gelu=False, out_dtype=jnp.bfloat16,
                  residual=None, ln_gamma=None, ln_beta=None, eps=1e-5):
    """(N, Din) @ (Din, Dout) + (Dout,), optional fused GELU or fused
    residual-add + LayerNorm epilogue.  Activations/weights are bf16 on the
    MXU; accumulation and the epilogue stay in f32."""
    n_rows, k_dim = x2d.shape
    n_out = w.shape[1]
    tm = _pick_tile(n_rows, TM_TARGET, 16)     # bf16 packs 16 rows / vreg
    tk = _pick_tile(k_dim, TK_TARGET, 128)
    b2 = b.reshape(1, n_out)
    flops = 2 * n_rows * k_dim * n_out
    out_bytes = n_rows * n_out * jnp.dtype(out_dtype).itemsize
    base_bytes = (n_rows * k_dim * x2d.dtype.itemsize
                  + k_dim * n_out * w.dtype.itemsize + out_bytes)

    if residual is not None:
        assert residual.shape == (n_rows, n_out)
        grid = (n_rows // tm, k_dim // tk)
        return pl.pallas_call(
            functools.partial(_linear_res_ln_kernel, eps=eps),
            out_shape=jax.ShapeDtypeStruct((n_rows, n_out), out_dtype),
            grid=grid,
            in_specs=[pl.BlockSpec((tm, tk), lambda i, kk: (i, kk)),
                      pl.BlockSpec((tk, n_out), lambda i, kk: (kk, 0)),
                      pl.BlockSpec((1, n_out), lambda i, kk: (0, 0)),
                      pl.BlockSpec((tm, n_out), lambda i, kk: (i, 0)),
                      pl.BlockSpec((1, n_out), lambda i, kk: (0, 0)),
                      pl.BlockSpec((1, n_out), lambda i, kk: (0, 0))],
            out_specs=pl.BlockSpec((tm, n_out), lambda i, kk: (i, 0)),
            scratch_shapes=[pltpu.VMEM((tm, n_out), jnp.float32)],
            compiler_params=pltpu.CompilerParams(
                dimension_semantics=("parallel", "arbitrary"),
                vmem_limit_bytes=VMEM_LIMIT),
            cost_estimate=pl.CostEstimate(
                flops=flops, transcendentals=0,
                bytes_accessed=base_bytes
                + n_rows * n_out * residual.dtype.itemsize),
        )(x2d, w, b2, residual,
          ln_gamma.reshape(1, n_out), ln_beta.reshape(1, n_out))

    tn = _pick_tile(n_out, TN_TARGET, 128)
    grid = (n_rows // tm, n_out // tn, k_dim // tk)
    return pl.pallas_call(
        functools.partial(_linear_kernel,
                          activation="gelu" if gelu else None),
        out_shape=jax.ShapeDtypeStruct((n_rows, n_out), out_dtype),
        grid=grid,
        in_specs=[pl.BlockSpec((tm, tk), lambda i, j, kk: (i, kk)),
                  pl.BlockSpec((tk, tn), lambda i, j, kk: (kk, j)),
                  pl.BlockSpec((1, tn), lambda i, j, kk: (0, j))],
        out_specs=pl.BlockSpec((tm, tn), lambda i, j, kk: (i, j)),
        scratch_shapes=[pltpu.VMEM((tm, tn), jnp.float32)],
        compiler_params=pltpu.CompilerParams(
            dimension_semantics=("parallel", "parallel", "arbitrary"),
            vmem_limit_bytes=VMEM_LIMIT),
        cost_estimate=pl.CostEstimate(
            flops=flops,
            transcendentals=(n_rows * n_out) if gelu else 0,
            bytes_accessed=base_bytes),
    )(x2d, w, b2)


def _inproj_pos_kernel(x_ref, w_ref, b_ref, pos_ref, o_ref):
    """Input projection + bias + learned positional encoding (fused epilogue).

    Tiny contraction (Din=16/32) -- kept as a single small Pallas kernel."""
    y = jnp.dot(x_ref[0].astype(jnp.bfloat16), w_ref[...],
                preferred_element_type=jnp.float32)
    o_ref[0] = (y + b_ref[...] + pos_ref[0]).astype(o_ref.dtype)


def pallas_input_proj_pos(x, w, b, pos):
    """x: (B, S, Din) -> (B, S, D) bf16, with pos (1, S, D) added in the epilogue."""
    bsz, s, din = x.shape
    dout = w.shape[1]
    ts = _pick_tile(s, 256, 8)
    grid = (bsz, s // ts)
    return pl.pallas_call(
        _inproj_pos_kernel,
        out_shape=jax.ShapeDtypeStruct((bsz, s, dout), jnp.bfloat16),
        grid=grid,
        in_specs=[pl.BlockSpec((1, ts, din), lambda bi, si: (bi, si, 0)),
                  pl.BlockSpec((din, dout), lambda bi, si: (0, 0)),
                  pl.BlockSpec((1, dout), lambda bi, si: (0, 0)),
                  pl.BlockSpec((1, ts, dout), lambda bi, si: (0, si, 0))],
        out_specs=pl.BlockSpec((1, ts, dout), lambda bi, si: (bi, si, 0)),
        compiler_params=pltpu.CompilerParams(
            dimension_semantics=("parallel", "parallel"),
            vmem_limit_bytes=VMEM_LIMIT),
    )(x, w, b.reshape(1, dout), pos)


def _attn_outproj_kernel(qkv_ref, wo_ref, bo_ref, o_ref, *, num_heads, scale):
    """All heads of one batch element, with the output projection fused.

    qkv_ref block: (1, S, 3D) packed [q | k | v] (bf16).  Per head we compute
    softmax(q_h k_h^T) v_h, normalize on (S, dh), and immediately multiply by
    the head's (dh, D) slice of W_o, accumulating into a full-width (S, D)
    f32 value.  The accumulation over heads *is* the concat+project, so there
    are no narrow masked stores; the single o_ref store is lane-dense."""
    s_len = qkv_ref.shape[1]
    d3 = qkv_ref.shape[2]
    d = d3 // 3
    dh = d // num_heads

    qkv = qkv_ref[0]                      # (S, 3D) bf16, lane-dense load
    wo = wo_ref[...]                      # (D, D)  bf16
    acc = jnp.zeros((s_len, d), jnp.float32)

    # TODO(synk): for long S switch to flash-style KV tiling (heads on a grid
    # axis + online softmax) instead of materializing the (S, S) score matrix.
    for h in range(num_heads):            # static unroll; per-head temps small
        lo = h * dh
        q_h = qkv[:, lo:lo + dh] * scale
        k_h = qkv[:, d + lo:d + lo + dh]
        v_h = qkv[:, 2 * d + lo:2 * d + lo + dh]
        sc = jax.lax.dot_general(q_h, k_h,
                                 dimension_numbers=(((1,), (1,)), ((), ())),
                                 preferred_element_type=jnp.float32)   # (S, S)
        sc = sc - jnp.max(sc, axis=-1, keepdims=True)
        p = jnp.exp(sc)
        l = jnp.sum(p, axis=-1, keepdims=True)                          # (S, 1)
        ctx = jnp.dot(p.astype(jnp.bfloat16), v_h,
                      preferred_element_type=jnp.float32)               # (S, dh)
        ctx = ctx * pl.reciprocal(l, approx=True)   # normalize on (S, dh)
        acc = acc + jnp.dot(ctx.astype(jnp.bfloat16), wo[lo:lo + dh, :],
                            preferred_element_type=jnp.float32)

    o_ref[0] = (acc + bo_ref[...]).astype(o_ref.dtype)


def pallas_attention_outproj(qkv, wo, bo, num_heads):
    """qkv: (B, S, 3D) packed -> (B, S, D) bf16; MHA with fused out-projection."""
    b, s, d3 = qkv.shape
    d = d3 // 3
    assert d % num_heads == 0, (d, num_heads)
    dh = d // num_heads
    scale = 1.0 / math.sqrt(dh)
    return pl.pallas_call(
        functools.partial(_attn_outproj_kernel, num_heads=num_heads,
                          scale=scale),
        out_shape=jax.ShapeDtypeStruct((b, s, d), jnp.bfloat16),
        grid=(b,),
        in_specs=[pl.BlockSpec((1, s, d3), lambda bi: (bi, 0, 0)),
                  pl.BlockSpec((d, d), lambda bi: (0, 0)),
                  pl.BlockSpec((1, d), lambda bi: (0, 0))],
        out_specs=pl.BlockSpec((1, s, d), lambda bi: (bi, 0, 0)),
        compiler_params=pltpu.CompilerParams(
            dimension_semantics=("parallel",),
            vmem_limit_bytes=VMEM_LIMIT),
    )(qkv, wo, bo.reshape(1, d))


def _ln_res_kernel(x_ref, r_ref, g_ref, b_ref, o_ref, *, eps):
    y = x_ref[...].astype(jnp.float32) + r_ref[...].astype(jnp.float32)
    mu = jnp.mean(y, axis=-1, keepdims=True)
    var = jnp.mean(jnp.square(y - mu), axis=-1, keepdims=True)
    o_ref[...] = ((y - mu) * jax.lax.rsqrt(var + eps) * g_ref[...]
                  + b_ref[...]).astype(o_ref.dtype)


def pallas_layernorm_residual(x2d, res2d, gamma, beta, eps=1e-5):
    """LayerNorm(x + residual) * gamma + beta, rows = tokens (row-tiled)."""
    n, d = x2d.shape
    tm = _pick_tile(n, 512, 16)
    grid = (n // tm,)
    return pl.pallas_call(
        functools.partial(_ln_res_kernel, eps=eps),
        out_shape=jax.ShapeDtypeStruct((n, d), jnp.bfloat16),
        grid=grid,
        in_specs=[pl.BlockSpec((tm, d), lambda i: (i, 0)),
                  pl.BlockSpec((tm, d), lambda i: (i, 0)),
                  pl.BlockSpec((1, d), lambda i: (0, 0)),
                  pl.BlockSpec((1, d), lambda i: (0, 0))],
        out_specs=pl.BlockSpec((tm, d), lambda i: (i, 0)),
        compiler_params=pltpu.CompilerParams(
            dimension_semantics=("parallel",),
            vmem_limit_bytes=VMEM_LIMIT),
    )(x2d, res2d, gamma.reshape(1, d), beta.reshape(1, d))


# --------------------------- model building blocks --------------------------

def multihead_attention(x, p, num_heads):
    """torch.nn.MultiheadAttention (batch_first, self-attention, eval mode).
    Fused (pre-concatenated) QKV projection + attention with fused out-proj."""
    b, s, d = x.shape
    x2 = x.reshape(b * s, d)
    qkv = pallas_linear(x2, p["wqkv"], p["bqkv"]).reshape(b, s, 3 * d)  # bf16
    return pallas_attention_outproj(qkv, p["wo"], p["bo"], num_heads)   # (B,S,D)


def transformer_encoder_layer(x, p, num_heads):
    """Post-LN nn.TransformerEncoderLayer (norm_first=False), GELU, eval mode."""
    b, s, d = x.shape
    attn = multihead_attention(x, p["attn"], num_heads)                 # (B,S,D)
    h = pallas_layernorm_residual(attn.reshape(b * s, d), x.reshape(b * s, d),
                                  p["ln1_g"], p["ln1_b"])
    ff = pallas_linear(h, p["w1"], p["b1"], gelu=True)
    # second FFN linear with residual-add + LayerNorm fused into the epilogue
    h = pallas_linear(ff, p["w2"], p["b2"], residual=h,
                      ln_gamma=p["ln2_g"], ln_beta=p["ln2_b"])
    return h.reshape(b, s, d)


def neuro_encoder(x, p, num_heads):
    """NeuroEncoder: fused input projection + pos encoding, transformer stack."""
    b, s, din = x.shape
    pos = p["pos"][:, :s, :]
    h = pallas_input_proj_pos(x, p["in_w"], p["in_b"], pos)
    for lp in p["layers"]:
        h = transformer_encoder_layer(h, lp, num_heads)
    return h


def multimodal_fusion(encoded, p, modality_order, num_heads=8):
    """MultimodalFusion: per-modality projection, stack, MHA, LN(residual)."""
    projected = []
    for m in modality_order:
        t = encoded[m]
        b, s, d = t.shape
        projected.append(
            pallas_linear(t.reshape(b * s, d),
                          p["proj"][m]["w"], p["proj"][m]["b"]).reshape(b, s, -1))
    stacked = jnp.stack(projected, axis=1)            # (B, M, S, D)
    b, m, s, d = stacked.shape
    stacked = stacked.reshape(b, m * s, d)
    fused = multihead_attention(stacked, p["attn"], num_heads)
    fused = pallas_layernorm_residual(fused.reshape(b * m * s, d),
                                      stacked.reshape(b * m * s, d),
                                      p["ln_g"], p["ln_b"])
    return fused.reshape(b, m * s, d)


def neurllm_forward(inputs, params, modality_order):
    encoded = {}
    for m in modality_order:
        encoded[m] = neuro_encoder(inputs[m], params["encoders"][m],
                                   params["encoder_heads"][m])
    fused = multimodal_fusion(encoded, params["fusion"], modality_order,
                              num_heads=8)
    # text_input is None -> nn.TransformerDecoder branch is skipped (output = fused)
    b, t, d = fused.shape
    logits = pallas_linear(fused.reshape(b * t, d),
                           params["out_w"], params["out_b"],
                           out_dtype=jnp.float32)
    return logits.reshape(b, t, -1)


# ------------------------------- param init --------------------------------

def init_params(key, modality_configs, hidden_dim, num_heads, vocab_size):
    """Weights are pre-cast to bf16 (MXU operand dtype) and QKV is
    pre-concatenated ONCE here, so no per-forward converts/concats remain."""
    keys = list(jax.random.split(key, 4096))
    ctr = [0]

    def nrm(shape):
        k = keys[ctr[0]]
        ctr[0] += 1
        return (0.02 * jax.random.normal(k, shape, dtype=jnp.float32)
                ).astype(jnp.bfloat16)

    def zeros(shape):
        return jnp.zeros(shape, jnp.float32)

    def ones(shape):
        return jnp.ones(shape, jnp.float32)

    def mha_p(d):
        return {"wqkv": nrm((d, 3 * d)), "bqkv": zeros((3 * d,)),
                "wo": nrm((d, d)), "bo": zeros((d,))}

    def encoder_layer_p(d):
        return {"attn": mha_p(d),
                "ln1_g": ones((d,)), "ln1_b": zeros((d,)),
                "w1": nrm((d, 4 * d)), "b1": zeros((4 * d,)),
                "w2": nrm((4 * d, d)), "b2": zeros((d,)),
                "ln2_g": ones((d,)), "ln2_b": zeros((d,))}

    params = {"encoders": {}, "encoder_heads": {}}
    for m, cfg in modality_configs.items():
        din = cfg.get("input_dim", 64)
        d = cfg.get("embed_dim", hidden_dim)
        nl = cfg.get("num_layers", 4)
        params["encoder_heads"][m] = cfg.get("num_heads", num_heads)
        params["encoders"][m] = {
            "in_w": nrm((din, d)), "in_b": zeros((d,)),
            # nn.Parameter(torch.zeros(1, 5000, embed_dim)) -- zeros by construction
            "pos": zeros((1, 5000, d)),
            "layers": [encoder_layer_p(d) for _ in range(nl)],
        }

    params["fusion"] = {
        "proj": {m: {"w": nrm((modality_configs[m].get("embed_dim", hidden_dim),
                               hidden_dim)),
                     "b": zeros((hidden_dim,))}
                 for m in modality_configs},
        "attn": mha_p(hidden_dim),
        "ln_g": ones((hidden_dim,)), "ln_b": zeros((hidden_dim,)),
    }
    params["out_w"] = nrm((hidden_dim, vocab_size))
    params["out_b"] = zeros((vocab_size,))
    return params


# ----------------------------------- main -----------------------------------

if __name__ == "__main__":
    # Small, consistent shapes: 2 modalities, batch=2, seq=8, hidden=128,
    # 8 heads (head_dim=16), 2 encoder layers per modality, vocab=256.
    modality_configs = {
        "eeg": {"input_dim": 16, "embed_dim": 128, "num_heads": 8, "num_layers": 2},
        "meg": {"input_dim": 32, "embed_dim": 128, "num_heads": 8, "num_layers": 2},
    }
    hidden_dim = 128
    num_heads = 12          # NeurLLM default; overridden per-modality by configs
    vocab_size = 256
    B, S = 2, 8

    key = jax.random.PRNGKey(0)
    k_params, k_eeg, k_meg = jax.random.split(key, 3)
    params = init_params(k_params, modality_configs, hidden_dim, num_heads,
                         vocab_size)

    inputs = {
        "eeg": jax.random.normal(k_eeg, (B, S, 16), dtype=jnp.float32),
        "meg": jax.random.normal(k_meg, (B, S, 32), dtype=jnp.float32),
    }
    modality_order = list(modality_configs.keys())

    logits = neurllm_forward(inputs, params, modality_order)
    logits = jax.block_until_ready(logits)
    assert logits.shape == (B, len(modality_order) * S, vocab_size), logits.shape
    assert bool(jnp.all(jnp.isfinite(logits)))
    print("KERNEL_OK")
</pallas_src>

<mosaic_0001>
module attributes {stable_mosaic.version = 11 : i64} {
  func.func @_inproj_pos_kernel(%arg0: i32, %arg1: i32, %arg2: memref<1x8x16xf32, #tpu.memory_space<vmem>>, %arg3: memref<16x128xbf16, #tpu.memory_space<vmem>>, %arg4: memref<1x128xf32, #tpu.memory_space<vmem>>, %arg5: memref<1x8x128xf32, #tpu.memory_space<vmem>>, %arg6: memref<1x8x128xbf16, #tpu.memory_space<vmem>>) attributes {dimension_semantics = [#tpu.dimension_semantics<parallel>, #tpu.dimension_semantics<parallel>], iteration_bounds = array<i64: 2, 1>, scalar_prefetch = 0 : i64, scratch_operands = 0 : i64, tpu.core_type = #tpu.core_type<tc>, window_params = [{transform_indices = @transform_0, window_bounds = array<i64: 1, 8, 16>}, {pipeline_mode = #tpu.pipeline_mode<synchronous>, transform_indices = @transform_1, window_bounds = array<i64: 16, 128>}, {pipeline_mode = #tpu.pipeline_mode<synchronous>, transform_indices = @transform_2, window_bounds = array<i64: 1, 128>}, {transform_indices = @transform_3, window_bounds = array<i64: 1, 8, 128>}, {transform_indices = @transform_4, window_bounds = array<i64: 1, 8, 128>}]} {
    %c0 = arith.constant 0 : index
    %c0_0 = arith.constant 0 : index
    %c0_1 = arith.constant 0 : index
    %0 = vector.load %arg2[%c0, %c0_0, %c0_1] : memref<1x8x16xf32, #tpu.memory_space<vmem>>, vector<1x8x16xf32>
    %1 = vector.shape_cast %0 : vector<1x8x16xf32> to vector<8x16xf32>
    %2 = arith.truncf %1 : vector<8x16xf32> to vector<8x16xbf16>
    %c0_2 = arith.constant 0 : index
    %c0_3 = arith.constant 0 : index
    %3 = vector.load %arg3[%c0_2, %c0_3] : memref<16x128xbf16, #tpu.memory_space<vmem>>, vector<16x128xbf16>
    %cst = arith.constant dense<0.000000e+00> : vector<8x128xf32>
    %4 = tpu.matmul %2, %3, %cst {dimension_numbers = #tpu.dot_dimension_numbers<[1], [0], [0], [1], [0, 0, 1, 1], [], []>} : vector<8x16xbf16>, vector<16x128xbf16>, vector<8x128xf32> -> vector<8x128xf32>
    %c0_4 = arith.constant 0 : index
    %c0_5 = arith.constant 0 : index
    %5 = vector.load %arg4[%c0_4, %c0_5] : memref<1x128xf32, #tpu.memory_space<vmem>>, vector<1x128xf32>
    %6 = vector.broadcast %5 : vector<1x128xf32> to vector<8x128xf32>
    %7 = arith.addf %4, %6 : vector<8x128xf32>
    %c0_6 = arith.constant 0 : index
    %c0_7 = arith.constant 0 : index
    %c0_8 = arith.constant 0 : index
    %8 = vector.load %arg5[%c0_6, %c0_7, %c0_8] : memref<1x8x128xf32, #tpu.memory_space<vmem>>, vector<1x8x128xf32>
    %9 = vector.shape_cast %8 : vector<1x8x128xf32> to vector<8x128xf32>
    %10 = arith.addf %7, %9 : vector<8x128xf32>
    %11 = arith.truncf %10 : vector<8x128xf32> to vector<8x128xbf16>
    %c0_9 = arith.constant 0 : index
    %c0_10 = arith.constant 0 : index
    %c0_11 = arith.constant 0 : index
    %12 = vector.load %arg6[%c0_9, %c0_10, %c0_11] : memref<1x8x128xbf16, #tpu.memory_space<vmem>>, vector<1x8x128xbf16>
    %13 = vector.shape_cast %12 : vector<1x8x128xbf16> to vector<8x128xbf16>
    %14 = vector.shape_cast %11 : vector<8x128xbf16> to vector<1x8x128xbf16>
    tpu.vector_store %arg6[%c0_9, %c0_10, %c0_11], %14 {strides = array<i32>} : memref<1x8x128xbf16, #tpu.memory_space<vmem>>, vector<1x8x128xbf16>,
    return
  }
  func.func @transform_0(%arg0: i32, %arg1: i32) -> (i32, i32, i32) {
    %c0_i32 = arith.constant 0 : i32
    %c0_i32_0 = arith.constant 0 : i32
    return %arg0, %arg1, %c0_i32 : i32, i32, i32
  }
  func.func @transform_1(%arg0: i32, %arg1: i32) -> (i32, i32) {
    %c0_i32 = arith.constant 0 : i32
    %c0_i32_0 = arith.constant 0 : i32
    %c0_i32_1 = arith.constant 0 : i32
    return %c0_i32, %c0_i32_0 : i32, i32
  }
  func.func @transform_2(%arg0: i32, %arg1: i32) -> (i32, i32) {
    %c0_i32 = arith.constant 0 : i32
    %c0_i32_0 = arith.constant 0 : i32
    %c0_i32_1 = arith.constant 0 : i32
    return %c0_i32, %c0_i32_0 : i32, i32
  }
  func.func @transform_3(%arg0: i32, %arg1: i32) -> (i32, i32, i32) {
    %c0_i32 = arith.constant 0 : i32
    %c0_i32_0 = arith.constant 0 : i32
    %c0_i32_1 = arith.constant 0 : i32
    return %c0_i32, %arg1, %c0_i32_0 : i32, i32, i32
  }
  func.func @transform_4(%arg0: i32, %arg1: i32) -> (i32, i32, i32) {
    %c0_i32 = arith.constant 0 : i32
    %c0_i32_0 = arith.constant 0 : i32
    return %arg0, %arg1, %c0_i32 : i32, i32, i32
  }
}

</mosaic_0001>

<llo_original>
// kernel: tpu_custom_call.1
$region0: #{tpu_custom_call.1}
  #allocation0 [shape = 'u32[]', space=smem, size = 0x4, offset = 0x4, fixed_abs, tag = 'smem constant byte address 0x4 - core index']
  #allocation1 [shape = 'u32[144,128]{1,0:T(1,128)}', space=vmem, size = 0x12000, scoped, tag = 'internal scratch']
  %s0 = inlined_call_operand.hbm [shape: f32[2,8,16], index: 0, kind: input, shape index: {}]
  %s1 = inlined_call_operand.hbm [shape: bf16[16,128], index: 1, kind: input, shape index: {}]
  %s2 = inlined_call_operand.vmem [shape: f32[1,128], index: 2, kind: input, shape index: {}]
  %s3 = inlined_call_operand.vmem [shape: f32[1,8,128], index: 3, kind: input, shape index: {}]
  %s4 = inlined_call_operand.hbm [shape: bf16[2,8,128], index: 4, kind: output, shape index: {}]
  %s5 = sld [smem:[#allocation0]]
  $region57: #{tpu_custom_call.1} parent=0
    _
  %s7 = ssub.s32 1, %s5
  %s8 = scalar_select 0, %s7, %s5
  $region1: #{tpu_custom_call.1} parent=0
    #allocation2 [shape = 'u8[8192]{0}', space=vmem, size = 0x2000, scoped, tag = 'input window, operand 0']
    #allocation3 [shape = 's32[2]{0}', space=sflag, size = 0x8, scoped, tag = 'scoped memory for tpu_custom_call.1']
    #allocation4 [shape = 's32[2]{0}', space=sflag, size = 0x8, scoped, tag = 'scoped memory for tpu_custom_call.1']
    #allocation5 [shape = 'u8[4096]{0}', space=vmem, size = 0x1000, scoped, tag = 'input window, operand 1, single buffered']
    #allocation6 [shape = 's32[1]{0}', space=sflag, size = 0x4, scoped, tag = 'scoped memory for tpu_custom_call.1']
    #allocation7 [shape = 'u8[4096]{0}', space=vmem, size = 0x1000, scoped, tag = 'output window, operand 0']
    %9 = vsyncpa [#allocation3], 0
    %s10 = scalar_lea.sflag [#allocation3], 1
    %11 = vsyncpa %s10, 0
    %12 = vsyncpa [#allocation6], 0
    %13 = vsyncpa [#allocation4], 0
    %s14 = scalar_lea.sflag [#allocation4], 1
    %15 = vsyncpa %s14, 0
    loop: start=0, step=1, limit=4
    $region2: #{tpu_custom_call.1} parent=1 // loop_pre_header
      _
    $region3: #{tpu_custom_call.1} parent=1 // loop_header
      %s17 = sphi 0, %s21
      %p18 = scmp.ge.s32.totalorder %s17, 4
      %s24 = sphi 0, %s36
      %s25 = sphi 0, %s32
      %s26 = sphi 0, %s24
      %s27 = sphi 0, %s25
      %s28 = sphi 0, %s26
      %s29 = sphi 0, %s27
      %s41 = sphi 0, %s43
      %s44 = sphi 0, %s41
      %s45 = sphi 0, %s44
      %s61 = sphi 0, %s45
      %s65 = sphi 0, %s65
      %s67 = sphi 0, %s65
      %s68 = sphi 0, %s67
      %s82 = sphi 0, %s68
      %s86 = sphi 0, %s86
      %s88 = sphi 0, %s86
      %s89 = sphi 0, %s88
      %s103 = sphi 0, %s89
      %s109 = sphi 0, %s111
      %s112 = sphi 0, %s109
      %s113 = sphi 0, %s112
      %s129 = sphi 0, %s113
      %s137 = sphi 0, %s139
      %s140 = sphi 0, %s137
      %s141 = sphi 0, %s140
      %s157 = sphi 0, %s141
    $region4: #{tpu_custom_call.1} parent=1 // loop_header_branch
      %20 = sbr.rel (%p18) target = $region8
    $region5: #{tpu_custom_call.1} parent=1 // loop_body
      %s22 = ssub.s32 %s17, 1
      %s23 = ssub.s32 %s17, 2
      %s30 = sadd.s32 1, %s25
      %p31 = scmp.ge.s32.totalorder %s30, 1
      %s32 = scalar_select %p31, 0, %s30
      %s33 = sadd.s32 1, %s24
      %s34 = scalar_select %p31, %s33, %s24
      %p35 = scmp.ge.s32.totalorder %s34, 2
      %s36 = scalar_select %p35, 0, %s34
      %s37 = ssub.s32 %s24, %s36
      %s38 = ssub.s32 %s25, %s32
      %s39 = sor.u32 %s37, %s38
      %p40 = scmp.eq.s32.totalorder %s39, 0
      %s42 = sadd.s32 %s41, 1
      %s43 = scalar_select %p40, %s41, %s42
      %p46 = pneg %p40
      %p47 = scmp.eq.s32.totalorder %s17, 1
      %p48 = por %p46, %p47
      %p49 = scmp.ne.s32.totalorder %s41, %s44
      %p50 = scmp.eq.s32.totalorder %s17, 0
      %p51 = por %p49, %p50
      %p52 = scmp.ne.s32.totalorder %s41, %s44
      %p53 = scmp.eq.s32.totalorder %s22, 1
      %p54 = por %p52, %p53
      %p55 = scmp.ne.s32.totalorder %s44, %s45
      %p56 = scmp.eq.s32.totalorder %s22, 0
      %p57 = por %p55, %p56
      %p58 = scmp.ne.s32.totalorder %s44, %s45
      %p59 = scmp.eq.s32.totalorder %s23, 1
      %p60 = por %p58, %p59
      %p62 = scmp.ne.s32.totalorder %s45, %s61
      %p63 = scmp.eq.s32.totalorder %s23, 0
      %p64 = por %p62, %p63
      %s66 = sadd.s32 %s65, 1
      %p69 = scmp.eq.s32.totalorder %s17, 1
      %p70 = scmp.ne.s32.totalorder %s65, %s67
      %p71 = scmp.eq.s32.totalorder %s17, 0
      %p72 = por %p70, %p71
      %p73 = scmp.ne.s32.totalorder %s65, %s67
      %p74 = scmp.eq.s32.totalorder %s22, 1
      %p75 = por %p73, %p74
      %p76 = scmp.ne.s32.totalorder %s67, %s68
      %p77 = scmp.eq.s32.totalorder %s22, 0
      %p78 = por %p76, %p77
      %p79 = scmp.ne.s32.totalorder %s67, %s68
      %p80 = scmp.eq.s32.totalorder %s23, 1
      %p81 = por %p79, %p80
      %p83 = scmp.ne.s32.totalorder %s68, %s82
      %p84 = scmp.eq.s32.totalorder %s23, 0
      %p85 = por %p83, %p84
      %s87 = sadd.s32 %s86, 1
      %p90 = scmp.eq.s32.totalorder %s17, 1
      %p91 = scmp.ne.s32.totalorder %s86, %s88
      %p92 = scmp.eq.s32.totalorder %s17, 0
      %p93 = por %p91, %p92
      %p94 = scmp.ne.s32.totalorder %s86, %s88
      %p95 = scmp.eq.s32.totalorder %s22, 1
      %p96 = por %p94, %p95
      %p97 = scmp.ne.s32.totalorder %s88, %s89
      %p98 = scmp.eq.s32.totalorder %s22, 0
      %p99 = por %p97, %p98
      %p100 = scmp.ne.s32.totalorder %s88, %s89
      %p101 = scmp.eq.s32.totalorder %s23, 1
      %p102 = por %p100, %p101
      %p104 = scmp.ne.s32.totalorder %s89, %s103
      %p105 = scmp.eq.s32.totalorder %s23, 0
      %p106 = por %p104, %p105
      %s107 = ssub.s32 %s25, %s32
      %p108 = scmp.eq.s32.totalorder %s107, 0
      %s110 = sadd.s32 %s109, 1
      %s111 = scalar_select %p108, %s109, %s110
      %p114 = pneg %p108
      %p115 = scmp.eq.s32.totalorder %s17, 1
      %p116 = por %p114, %p115
      %p117 = scmp.ne.s32.totalorder %s109, %s112
      %p118 = scmp.eq.s32.totalorder %s17, 0
      %p119 = por %p117, %p118
      %p120 = scmp.ne.s32.totalorder %s109, %s112
      %p121 = scmp.eq.s32.totalorder %s22, 1
      %p122 = por %p120, %p121
      %p123 = scmp.ne.s32.totalorder %s112, %s113
      %p124 = scmp.eq.s32.totalorder %s22, 0
      %p125 = por %p123, %p124
      %p126 = scmp.ne.s32.totalorder %s112, %s113
      %p127 = scmp.eq.s32.totalorder %s23, 1
      %p128 = por %p126, %p127
      %p130 = scmp.ne.s32.totalorder %s113, %s129
      %p131 = scmp.eq.s32.totalorder %s23, 0
      %p132 = por %p130, %p131
      %s133 = ssub.s32 %s24, %s36
      %s134 = ssub.s32 %s25, %s32
      %s135 = sor.u32 %s133, %s134
      %p136 = scmp.eq.s32.totalorder %s135, 0
      %s138 = sadd.s32 %s137, 1
      %s139 = scalar_select %p136, %s137, %s138
      %p142 = pneg %p136
      %p143 = scmp.eq.s32.totalorder %s17, 1
      %p144 = por %p142, %p143
      %p145 = scmp.ne.s32.totalorder %s137, %s140
      %p146 = scmp.eq.s32.totalorder %s17, 0
      %p147 = por %p145, %p146
      %p148 = scmp.ne.s32.totalorder %s137, %s140
      %p149 = scmp.eq.s32.totalorder %s22, 1
      %p150 = por %p148, %p149
      %p151 = scmp.ne.s32.totalorder %s140, %s141
      %p152 = scmp.eq.s32.totalorder %s22, 0
      %p153 = por %p151, %p152
      %p154 = scmp.ne.s32.totalorder %s140, %s141
      %p155 = scmp.eq.s32.totalorder %s23, 1
      %p156 = por %p154, %p155
      %p158 = scmp.ne.s32.totalorder %s141, %s157
      %p159 = scmp.eq.s32.totalorder %s23, 0
      %p160 = por %p158, %p159
      %p161 = scmp.le.s32.totalorder 1, %s17
      %p162 = scmp.lt.s32.totalorder %s17, 3
      %p163 = pnand %p161, %p162
      %p164 = pneg %p163
      // Predicated region
      $region9: #{tpu_custom_call.1} parent=5 // pred_check
        _
      $region10: #{tpu_custom_call.1} parent=5 // pred_check_branch
        %166 = sbr.rel (%p163) target = $region12
      $region11: #{tpu_custom_call.1} parent=5 // pred_region
        %s167 = ssub.s32 %s17, 1
        // Predicated region
        $region13: #{tpu_custom_call.1} parent=11 // pred_check
          %p168 = pneg %p78
        $region14: #{tpu_custom_call.1} parent=11 // pred_check_branch
          %170 = sbr.rel (%p168) target = $region16
        $region15: #{tpu_custom_call.1} parent=11 // pred_region
          %s172 = ssub.s32 128, 128
          %173 = vsyncadd [#allocation6], %s172
          %s174 = sshll.u32 [#allocation5], 4
          %s175 = int_to_ptr.vmem [resolvable:$true] %s174
          %180 = dma.hbm_to_vmem [thread:$0]  %s1, 128, %s175, [#allocation6], 64, 64, 4
        $region16: #{tpu_custom_call.1} parent=11 // pred_fallthru
          _
        // Predicated region
        $region17: #{tpu_custom_call.1} parent=11 // pred_check
          %p181 = pneg %p99
        $region18: #{tpu_custom_call.1} parent=11 // pred_check_branch
          %183 = sbr.rel (%p181) target = $region20
        $region19: #{tpu_custom_call.1} parent=11 // pred_region
          _
        $region20: #{tpu_custom_call.1} parent=11 // pred_fallthru
          _
        // Predicated region
        $region21: #{tpu_custom_call.1} parent=11 // pred_check
          %p184 = pneg %p125
        $region22: #{tpu_custom_call.1} parent=11 // pred_check_branch
          %186 = sbr.rel (%p184) target = $region24
        $region23: #{tpu_custom_call.1} parent=11 // pred_region
          %p187 = scmp.lt.s32.totalorder %s27, 0
          %s188 = scalar_select %p187, %s27, 0
          %s189 = smul.addr %s188, 8
          %s190 = scalar_lea.vmem %s3, %s189
        $region24: #{tpu_custom_call.1} parent=11 // pred_fallthru
          _
      $region12: #{tpu_custom_call.1} parent=5 // pred_fallthru
        _
      %p191 = scmp.lt.s32.totalorder %s17, 2
      // Predicated region
      $region25: #{tpu_custom_call.1} parent=5 // pred_check
        %p192 = pneg %p191
      $region26: #{tpu_custom_call.1} parent=5 // pred_check_branch
        %194 = sbr.rel (%p192) target = $region28
      $region27: #{tpu_custom_call.1} parent=5 // pred_region
        // Predicated region
        $region29: #{tpu_custom_call.1} parent=27 // pred_check
          %p195 = pneg %p51
        $region30: #{tpu_custom_call.1} parent=27 // pred_check_branch
          %197 = sbr.rel (%p195) target = $region32
        $region31: #{tpu_custom_call.1} parent=27 // pred_region
          %s198 = sand.u32 %s41, 1
          %s199 = scalar_lea.sflag [#allocation3], %s198
          %s200 = sand.u32 %s41, 1
          %s201 = smul.addr %s200, 8
          %s202 = scalar_lea.vmem [#allocation2], %s201
          %s204 = ssub.s32 128, 128
          %205 = vsyncadd %s199, %s204
          %s206 = sadd.s32 %s25, %s24
          %s207 = smul.addr %s206, 128
          %s208 = scalar_lea.hbm %s0, %s207
          %s210 = sshll.u32 %s202, 4
          %s211 = int_to_ptr.vmem [resolvable:$true] %s210
          %213 = dma.hbm_to_vmem [thread:$0]  %s208, 128, %s211, %s199
        $region32: #{tpu_custom_call.1} parent=27 // pred_fallthru
          _
      $region28: #{tpu_custom_call.1} parent=5 // pred_fallthru
        _
      %p214 = scmp.le.s32.totalorder 1, %s17
      %p215 = scmp.lt.s32.totalorder %s17, 3
      %p216 = pnand %p214, %p215
      %p217 = pneg %p216
      // Predicated region
      $region33: #{tpu_custom_call.1} parent=5 // pred_check
        _
      $region34: #{tpu_custom_call.1} parent=5 // pred_check_branch
        %219 = sbr.rel (%p216) target = $region36
      $region35: #{tpu_custom_call.1} parent=5 // pred_region
        %s220 = ssub.s32 %s17, 1
        %s221 = sand.u32 %s44, 1
        %s222 = scalar_lea.sflag [#allocation3], %s221
        %s223 = sand.u32 %s44, 1
        %s224 = smul.addr %s223, 8
        %s225 = scalar_lea.vmem [#allocation2], %s224
        // Predicated region
        $region37: #{tpu_custom_call.1} parent=35 // pred_check
          %p226 = pneg %p57
        $region38: #{tpu_custom_call.1} parent=35 // pred_check_branch
          %228 = sbr.rel (%p226) target = $region40
        $region39: #{tpu_custom_call.1} parent=35 // pred_region
          %229 = dma.done %s222, 128
        $region40: #{tpu_custom_call.1} parent=35 // pred_fallthru
          _
        // Predicated region
        $region41: #{tpu_custom_call.1} parent=35 // pred_check
          %p230 = pneg %p78
        $region42: #{tpu_custom_call.1} parent=35 // pred_check_branch
          %232 = sbr.rel (%p230) target = $region44
        $region43: #{tpu_custom_call.1} parent=35 // pred_region
          %233 = dma.done [#allocation6], 128
        $region44: #{tpu_custom_call.1} parent=35 // pred_fallthru
          _
        %s234 = sand.u32 %s44, 1
        %s235 = scalar_lea.sflag [#allocation3], %s234
        %s236 = sand.u32 %s44, 1
        %s237 = smul.addr %s236, 8
        %s238 = scalar_lea.vmem [#allocation2], %s237
        %p239 = pneg %p57
        %p240 = pneg %p54
        %p241 = pneg %p78
        %p242 = pneg %p75
        %p243 = pneg %p99
        %p244 = pneg %p96
        %p245 = scmp.lt.s32.totalorder %s27, 0
        %s246 = scalar_select %p245, %s27, 0
        %s247 = smul.addr %s246, 8
        %s248 = scalar_lea.vmem %s3, %s247
        %p249 = pneg %p125
        %p250 = pneg %p122
        %p251 = pneg %p153
        %p252 = pneg %p150
        %s253 = sand.u32 %s140, 1
        %s254 = scalar_lea.sflag [#allocation4], %s253
        %s255 = sand.u32 %s140, 1
        %s256 = smul.addr %s255, 4
        %s257 = scalar_lea.vmem [#allocation7], %s256
        %p258 = scmp.lt.s32.totalorder %s27, 0
        %s259 = scalar_select %p258, %s27, 0
        %s260 = smul.addr %s259, 8
        %s261 = scalar_lea.vmem %s3, %s260
        %v263 = vld [vmem:[%s225] sm:$0xff]
        %v264 = vpack.c.bf16 %v263, %v263
        %v265 = vld [vmem:[#allocation5] sm:$0xf]
        %v266 = vld [vmem:[#allocation5 + $0x4] sm:$0xf]
        %v267 = vld [vmem:[%s2] sm:$0x1]
        %v269 = vlaneseq
        %v270 = vshrl.u32 %v269, 7
        %v271 = vsub.s32 0, %v270
        %v272 = vrot.slane %v267, %v271
        %v276 = vunpack.c.l.b16 %v265
        %v277 = vunpack.c.l.b16 %v266
        %v278 = vpack.c.b16 %v277, %v276
        %vm280 = vcmask 130048
        %v282 = vsel %vm280, %v264, 0
        %284 = vmatprep.subr.bf16.mxu0 0
        %285 = vmatpush1.bf16.msra.mxu0 %v278
        %286 = vmatprep.subr.bf16.mxu0 0
        %287 = vmatpush1.bf16.msra.mxu0 0
        %288 = vmatprep.subr.bf16.mxu0 0
        %289 = vmatpush1.bf16.msra.mxu0 0
        %290 = vmatprep.subr.bf16.mxu0 0
        %291 = vmatpush1.bf16.msra.mxu0 0
        %292 = vmatprep.subr.bf16.mxu0 0
        %293 = vmatpush1.bf16.msra.mxu0 0
        %294 = vmatprep.subr.bf16.mxu0 0
        %295 = vmatpush1.bf16.msra.mxu0 0
        %296 = vmatprep.subr.bf16.mxu0 0
        %297 = vmatpush1.bf16.msra.mxu0 0
        %298 = vmatprep.subr.bf16.mxu0 0
        %299 = vmatpush1.bf16.msra.mxu0 0
        %300 = vmatprep.subr.bf16.mxu0 0
        %301 = vmatpush1.bf16.msra.mxu0 0
        %302 = vmatprep.subr.bf16.mxu0 0
        %303 = vmatpush1.bf16.msra.mxu0 0
        %304 = vmatprep.subr.bf16.mxu0 0
        %305 = vmatpush1.bf16.msra.mxu0 0
        %306 = vmatprep.subr.bf16.mxu0 0
        %307 = vmatpush1.bf16.msra.mxu0 0
        %308 = vmatprep.subr.bf16.mxu0 0
        %309 = vmatpush1.bf16.msra.mxu0 0
        %310 = vmatprep.subr.bf16.mxu0 0
        %311 = vmatpush1.bf16.msra.mxu0 0
        %312 = vmatprep.subr.bf16.mxu0 0
        %313 = vmatpush1.bf16.msra.mxu0 0
        %314 = vmatprep.subr.bf16.mxu0 0
        %315 = vmatpush1.bf16.msra.mxu0 0
        %316 = vmatprep.mubr.bf16.mxu0 0
        %317 = vmatmul.mubr.bf16.gmra.mrb[0].mxu0 %v282
        %v318 = vpop.f32.mrb[0].mxu0
        %v319 = vadd.f32 %v272, %v318
        %v320 = vpop.f32.mrb[0].mxu0
        %v321 = vpop.f32.mrb[0].mxu0
        %v322 = vpop.f32.mrb[0].mxu0
        %323 = vdwg.mxu0
        %v324 = vld [vmem:[%s261] sm:$0xff]
        %v325 = vadd.f32 %v319, %v324
        %v326 = vpack.c.bf16 %v325, %v325
        %327 = vst [vmem:[%s257] sm:$0xf] %v326
        %s328 = sand.u32 %s140, 1
        %s329 = scalar_lea.sflag [#allocation4], %s328
        %s330 = sand.u32 %s140, 1
        %s331 = smul.addr %s330, 4
        %s332 = scalar_lea.vmem [#allocation7], %s331
        // Predicated region
        $region45: #{tpu_custom_call.1} parent=35 // pred_check
          %p333 = pneg %p150
        $region46: #{tpu_custom_call.1} parent=35 // pred_check_branch
          %335 = sbr.rel (%p333) target = $region48
        $region47: #{tpu_custom_call.1} parent=35 // pred_region
          %s337 = ssub.s32 64, 64
          %338 = vsyncadd %s329, %s337
          %s339 = sadd.s32 %s27, %s26
          %s340 = smul.addr %s339, 64
          %s341 = scalar_lea.hbm %s4, %s340
          %s343 = sshll.u32 %s332, 4
          %s344 = int_to_ptr.vmem [resolvable:$true] %s343
          %346 = dma.vmem_to_hbm [thread:$0]  %s344, 64, %s341, %s329
        $region48: #{tpu_custom_call.1} parent=35 // pred_fallthru
          _
      $region36: #{tpu_custom_call.1} parent=5 // pred_fallthru
        _
      %p347 = scmp.le.s32.totalorder 2, %s17
      // Predicated region
      $region49: #{tpu_custom_call.1} parent=5 // pred_check
        %p348 = pneg %p347
      $region50: #{tpu_custom_call.1} parent=5 // pred_check_branch
        %350 = sbr.rel (%p348) target = $region52
      $region51: #{tpu_custom_call.1} parent=5 // pred_region
        %s351 = ssub.s32 %s17, 2
        // Predicated region
        $region53: #{tpu_custom_call.1} parent=51 // pred_check
          %p352 = pneg %p156
        $region54: #{tpu_custom_call.1} parent=51 // pred_check_branch
          %354 = sbr.rel (%p352) target = $region56
        $region55: #{tpu_custom_call.1} parent=51 // pred_region
          %s355 = sand.u32 %s141, 1
          %s356 = scalar_lea.sflag [#allocation4], %s355
          %s357 = sand.u32 %s141, 1
          %s358 = smul.addr %s357, 4
          %s359 = scalar_lea.vmem [#allocation7], %s358
          %360 = dma.done %s356, 64
        $region56: #{tpu_custom_call.1} parent=51 // pred_fallthru
          _
      $region52: #{tpu_custom_call.1} parent=5 // pred_fallthru
        _
    $region6: #{tpu_custom_call.1} parent=1 // loop_footer
      %s21 = sadd.s32 1, %s17
    $region7: #{tpu_custom_call.1} parent=1 // loop_footer_branch
      %16 = sbr.rel target = $region3
    $region8: #{tpu_custom_call.1} parent=1 // loop_exit
      _
    %361 = vsyncpa [#allocation3], 1
    %s362 = scalar_lea.sflag [#allocation3], 1
    %363 = vsyncpa %s362, 1
    %364 = vsyncpa [#allocation6], 1
    %365 = vsyncpa [#allocation4], 1
    %s366 = scalar_lea.sflag [#allocation4], 1
    %367 = vsyncpa %s366, 1

</llo_original>
